<compile_context>
chip_gen: v7x
topology: tpu7x:2x2x1
jax: 0.10.0
libtpu: 0.0.40
codegen_flags: <defaults>
</compile_context>

<pallas_src>
import functools

import jax
import jax.numpy as jnp
import numpy as np
from jax import lax
from jax.experimental import pallas as pl
from jax.experimental.pallas import tpu as pltpu


# --------------------------------------------------------------------------
# Hardware-aware sizing helpers.
# --------------------------------------------------------------------------
def _vmem_budget_bytes() -> int:
    """~80% of physical VMEM; falls back to 64 MiB (v7x-safe) if unknown."""
    try:
        cap = int(pltpu.get_tpu_info().vmem_capacity_bytes)
    except Exception:  # noqa: BLE001 - info query is best-effort
        cap = 64 * 1024 * 1024
    return int(0.8 * cap)


def _pick_block_rows(batch_size: int) -> int:
    """Largest sublane-aligned divisor of batch_size for the prologue grid."""
    for cand in (512, 256, 128, 64, 32, 16, 8):
        if cand <= batch_size and batch_size % cand == 0:
            return cand
    return batch_size


def _pick_tile(n_rows: int, dim: int, mm_bytes: int, budget: int) -> int:
    """Pair-tile size: largest multiple-of-8 divisor of 2B that fits VMEM.

    Capped at 256 (matches the 256x256 MXU M dimension on v6e/v7x and keeps
    the exp tile modest); a 512 cap could be allowed on v6e's 128 MiB VMEM.
    """
    divisors = [c for c in (256, 128, 64, 32, 16, 8) if n_rows % c == 0]
    if not divisors:
        return n_rows  # degenerate (2B not a multiple of 8); still correct.
    for cand in divisors:
        est = (2 * n_rows * dim * mm_bytes      # resident reps (+ buffer slack)
               + 3 * cand * cand * 4            # sim tile + exp tile + slack
               + 4 * cand * dim * 4             # qi/qj slices + f32 casts
               + 6 * n_rows * 4)                # row/col accumulators
        if est <= budget:
            return cand
    return divisors[-1]


# --------------------------------------------------------------------------
# Stage 1: fused normalize + 1/T folding + positives.
# --------------------------------------------------------------------------
def _normalize_kernel(p1_ref, p2_ref, reps_ref, pos_ref, *, inv_sqrt_t, out_dtype):
    eps2 = 1e-24  # (F.normalize default eps = 1e-12)^2
    x1 = p1_ref[...].astype(jnp.float32)
    x2 = p2_ref[...].astype(jnp.float32)
    # x / max(||x||, eps) == x * rsqrt(max(||x||^2, eps^2)); 1/sqrt(T) folded
    # in so the downstream MXU product is already sim / T.
    s1 = inv_sqrt_t * lax.rsqrt(
        jnp.maximum(jnp.sum(x1 * x1, axis=1, keepdims=True), eps2))
    s2 = inv_sqrt_t * lax.rsqrt(
        jnp.maximum(jnp.sum(x2 * x2, axis=1, keepdims=True), eps2))
    z1 = x1 * s1
    z2 = x2 * s2
    reps_ref[0] = z1.astype(out_dtype)
    reps_ref[1] = z2.astype(out_dtype)
    # positives / T in f32 (row-wise dot; no [2B,2B] diagonal extraction).
    pos_ref[...] = jnp.sum(z1 * z2, axis=1, keepdims=True)


# --------------------------------------------------------------------------
# Stage 2: symmetric block-pair accumulation of exp(sim/T) row/col sums.
# --------------------------------------------------------------------------
def _pair_denominator_kernel(bi_tab_ref, bj_tab_ref, reps_ref, drow_ref, dcol_ref,
                             *, tile, steps_per_shard):
    p = pl.program_id(0)
    s = pl.program_id(1)

    @pl.when(s == 0)
    def _init():
        drow_ref[...] = jnp.zeros_like(drow_ref)
        dcol_ref[...] = jnp.zeros_like(dcol_ref)

    idx = p * steps_per_shard + s
    bi = bi_tab_ref[idx]
    bj = bj_tab_ref[idx]
    valid = bi >= 0                 # padded entries carry -1 -> no-op step
    bi_c = jnp.maximum(bi, 0)
    bj_c = jnp.maximum(bj, 0)
    is_diag = bi_c == bj_c

    @pl.when(valid)
    def _compute():
        ri = pl.multiple_of(bi_c * tile, tile)
        rj = pl.multiple_of(bj_c * tile, tile)
        qi = reps_ref[pl.ds(ri, tile), :]
        qj = reps_ref[pl.ds(rj, tile), :]
        # sim / T for this tile; contract dim 1 vs dim 1 (q @ k.T form).
        sim = lax.dot_general(qi, qj, (((1,), (1,)), ((), ())),
                              preferred_element_type=jnp.float32)
        e = jnp.exp(sim)
        row = jnp.sum(e, axis=1, keepdims=True)            # (tile, 1)

        @pl.when(is_diag)
        def _diag():
            # Subtract exp(sim[i,i]/T); diag recomputed from the same values
            # the MXU saw (f32 accumulation), so the cancellation is ulp-level.
            qf = qi.astype(jnp.float32)
            self_term = jnp.exp(jnp.sum(qf * qf, axis=1, keepdims=True))
            drow_ref[pl.ds(ri, tile), :] += row - self_term

        @pl.when(jnp.logical_not(is_diag))
        def _off():
            drow_ref[pl.ds(ri, tile), :] += row
            # Column sums of this tile == row sums of the mirrored tile
            # (bj, bi); accumulate them in lane layout keyed by block bj so no
            # per-step transpose is needed.
            col = jnp.sum(e, axis=0, keepdims=True)         # (1, tile)
            dcol_ref[bj_c] = dcol_ref[bj_c] + col


# --------------------------------------------------------------------------
# Stage 3: combine partials and reduce to the scalar loss.
# --------------------------------------------------------------------------
def _finalize_kernel(drow_ref, dcol_ref, pos_ref, loss_ref, *, n_rows):
    den = drow_ref[...] + dcol_ref[...]                     # (P, 2B, 1)
    den = jnp.sum(den, axis=0)                              # (2B, 1)
    log_sum = jnp.sum(jnp.log(den), axis=0, keepdims=True)  # (1, 1)
    pos_sum = jnp.sum(pos_ref[...], axis=0, keepdims=True)  # (1, 1)
    # loss = mean_r [ log(denom_r) - pos_r ]; pos repeats for both halves.
    loss_ref[...] = (log_sum - 2.0 * pos_sum) * (1.0 / n_rows)


# --------------------------------------------------------------------------
# Wrapper.
# --------------------------------------------------------------------------
def contrastive_loss(proj_1, proj_2, temperature=0.5, matmul_dtype=jnp.bfloat16):
    """Pallas implementation of ContrastiveLoss.forward. Returns a scalar.

    matmul_dtype=jnp.bfloat16 (default) runs the MXU at full rate; pass
    jnp.float32 for a bit-faithful (to ~1e-6) match of the f32 reference.
    """
    b, d = (int(proj_1.shape[0]), int(proj_1.shape[1]))
    n = 2 * b
    mm_dtype = jnp.dtype(matmul_dtype)
    mm_bytes = mm_dtype.itemsize
    inv_sqrt_t = float(1.0 / float(temperature) ** 0.5)
    budget = _vmem_budget_bytes()

    # ---- Stage 1: normalize + scale + positives (row-blocked, pipelined) ---
    br = _pick_block_rows(b)
    norm_kernel = functools.partial(
        _normalize_kernel, inv_sqrt_t=inv_sqrt_t, out_dtype=mm_dtype)
    reps2, pos = pl.pallas_call(
        norm_kernel,
        out_shape=(jax.ShapeDtypeStruct((2, b, d), mm_dtype),
                   jax.ShapeDtypeStruct((b, 1), jnp.float32)),
        grid=(b // br,),
        in_specs=[pl.BlockSpec((br, d), lambda i: (i, 0)),
                  pl.BlockSpec((br, d), lambda i: (i, 0))],
        out_specs=(pl.BlockSpec((2, br, d), lambda i: (0, i, 0)),
                   pl.BlockSpec((br, 1), lambda i: (i, 0))),
        compiler_params=pltpu.CompilerParams(
            dimension_semantics=("parallel",),
            vmem_limit_bytes=int(min(max(10 * br * d * 4, 16 * 1024 * 1024),
                                     budget))),
    )(proj_1, proj_2)
    reps = reps2.reshape(n, d)          # contiguous -> free reshape

    # ---- Stage 2: symmetric pairwise exp-sim accumulation ------------------
    tile = _pick_tile(n, d, mm_bytes, budget)
    if n % tile != 0:
        tile = n
    nb = n // tile
    pairs = [(i, j) for i in range(nb) for j in range(i + 1)]
    npairs = len(pairs)
    num_shards = 2 if npairs >= 2 else 1          # megacore split on v7x
    steps = -(-npairs // num_shards)
    pad = num_shards * steps - npairs
    bi_tab = jnp.asarray([pr[0] for pr in pairs] + [-1] * pad, dtype=jnp.int32)
    bj_tab = jnp.asarray([pr[1] for pr in pairs] + [-1] * pad, dtype=jnp.int32)

    pair_kernel = functools.partial(
        _pair_denominator_kernel, tile=tile, steps_per_shard=steps)
    est_main = (2 * n * d * mm_bytes + 3 * tile * tile * 4
                + 4 * tile * d * 4 + 6 * n * 4)
    vmem_main = int(min(max(2 * est_main, 32 * 1024 * 1024), budget))

    drow, dcol = pl.pallas_call(
        pair_kernel,
        out_shape=(jax.ShapeDtypeStruct((num_shards, n, 1), jnp.float32),
                   jax.ShapeDtypeStruct((num_shards, nb, 1, tile), jnp.float32)),
        grid_spec=pltpu.PrefetchScalarGridSpec(
            num_scalar_prefetch=2,
            grid=(num_shards, steps),
            in_specs=[pl.BlockSpec((n, d), lambda p, s, *_: (0, 0))],
            out_specs=[
                pl.BlockSpec((pl.Squeezed(), n, 1),
                             lambda p, s, *_: (p, 0, 0)),
                pl.BlockSpec((pl.Squeezed(), nb, 1, tile),
                             lambda p, s, *_: (p, 0, 0, 0)),
            ]),
        compiler_params=pltpu.CompilerParams(
            dimension_semantics=("parallel", "arbitrary"),
            vmem_limit_bytes=vmem_main),
        cost_estimate=pl.CostEstimate(
            flops=2 * npairs * tile * tile * d,
            transcendentals=npairs * tile * tile + 2 * n,
            bytes_accessed=2 * b * d * 4 + n * d * mm_bytes + 8 * n * 4),
    )(bi_tab, bj_tab, reps)

    # (P, nb, 1, tile) -> (P, 2B, 1): contiguous, free; aligns col-sums with
    # the row-sum accumulator layout.
    dcol = dcol.reshape(num_shards, n, 1)

    # ---- Stage 3: finalize --------------------------------------------------
    fin_kernel = functools.partial(_finalize_kernel, n_rows=n)
    loss = pl.pallas_call(
        fin_kernel,
        out_shape=jax.ShapeDtypeStruct((1, 1), jnp.float32),
        in_specs=[pl.BlockSpec(memory_space=pltpu.MemorySpace.VMEM)] * 3,
        out_specs=pl.BlockSpec(memory_space=pltpu.MemorySpace.VMEM),
    )(drow, dcol, pos)
    return loss[0, 0]


# --------------------------------------------------------------------------
# Pure-JAX reference mirroring the PyTorch forward pass.
# --------------------------------------------------------------------------
def _reference_loss(proj_1, proj_2, temperature=0.5):
    eps = 1e-12
    b = proj_1.shape[0]
    z_i = proj_1 / jnp.maximum(jnp.linalg.norm(proj_1, axis=1, keepdims=True), eps)
    z_j = proj_2 / jnp.maximum(jnp.linalg.norm(proj_2, axis=1, keepdims=True), eps)
    reps = jnp.concatenate([z_i, z_j], axis=0)
    sim = jnp.matmul(reps, reps.T, precision=lax.Precision.HIGHEST)
    sim_ij = jnp.diagonal(sim, offset=b)
    sim_ji = jnp.diagonal(sim, offset=-b)
    positives = jnp.concatenate([sim_ij, sim_ji], axis=0)
    nominator = jnp.exp(positives / temperature)
    mask = 1.0 - jnp.eye(2 * b)
    denominator = jnp.sum(mask * jnp.exp(sim / temperature), axis=1)
    all_losses = -jnp.log(nominator / denominator)
    return jnp.sum(all_losses) / (2.0 * b)


if __name__ == "__main__":
    key = jax.random.PRNGKey(0)
    temperature = 0.5

    # (8, 32): tiny/unaligned dims; (16, 128): lane-aligned; (256, 128):
    # exercises multiple pair tiles (off-diagonal path, column accumulator,
    # sentinel padding and the 2-shard "parallel" axis).
    for batch, dim in ((8, 32), (16, 128), (256, 128)):
        k1, k2 = jax.random.split(jax.random.fold_in(key, batch * 1000 + dim))
        proj_1 = jax.random.normal(k1, (batch, dim), dtype=jnp.float32)
        proj_2 = jax.random.normal(k2, (batch, dim), dtype=jnp.float32)

        ref = jax.block_until_ready(_reference_loss(proj_1, proj_2, temperature))

        # Exact path (f32 MXU) -- tight tolerance vs the f32 reference.
        loss_f32 = jax.block_until_ready(
            contrastive_loss(proj_1, proj_2, temperature,
                             matmul_dtype=jnp.float32))
        np.testing.assert_allclose(np.asarray(loss_f32), np.asarray(ref),
                                   rtol=1e-5, atol=1e-5)

        # Fast path (bf16 MXU operands, f32 accumulation / VPU / EUP math).
        loss_bf16 = jax.block_until_ready(
            contrastive_loss(proj_1, proj_2, temperature,
                             matmul_dtype=jnp.bfloat16))
        np.testing.assert_allclose(np.asarray(loss_bf16), np.asarray(ref),
                                   rtol=3e-2, atol=3e-2)

    print("KERNEL_OK")
</pallas_src>

<mosaic_0001>
module attributes {stable_mosaic.version = 11 : i64} {
  func.func @_normalize_kernel(%arg0: i32, %arg1: memref<8x32xf32, #tpu.memory_space<vmem>>, %arg2: memref<8x32xf32, #tpu.memory_space<vmem>>, %arg3: memref<2x8x32xf32, #tpu.memory_space<vmem>>, %arg4: memref<8x1xf32, #tpu.memory_space<vmem>>) attributes {dimension_semantics = [#tpu.dimension_semantics<parallel>], iteration_bounds = array<i64: 1>, scalar_prefetch = 0 : i64, scratch_operands = 0 : i64, tpu.core_type = #tpu.core_type<tc>, window_params = [{transform_indices = @transform_0, window_bounds = array<i64: 8, 32>}, {transform_indices = @transform_1, window_bounds = array<i64: 8, 32>}, {transform_indices = @transform_2, window_bounds = array<i64: 2, 8, 32>}, {transform_indices = @transform_3, window_bounds = array<i64: 8, 1>}]} {
    %c0 = arith.constant 0 : index
    %c0_0 = arith.constant 0 : index
    %0 = vector.load %arg1[%c0, %c0_0] : memref<8x32xf32, #tpu.memory_space<vmem>>, vector<8x32xf32>
    %c0_1 = arith.constant 0 : index
    %c0_2 = arith.constant 0 : index
    %1 = vector.load %arg2[%c0_1, %c0_2] : memref<8x32xf32, #tpu.memory_space<vmem>>, vector<8x32xf32>
    %2 = arith.mulf %0, %0 : vector<8x32xf32>
    %cst = arith.constant dense<0.000000e+00> : vector<8xf32>
    %3 = vector.multi_reduction <add>, %2, %cst [1] : vector<8x32xf32> to vector<8xf32>
    %4 = vector.shape_cast %3 : vector<8xf32> to vector<8x1xf32>
    %cst_3 = arith.constant 1.000000e-24 : f32
    %5 = vector.broadcast %cst_3 : f32 to vector<8x1xf32>
    %6 = arith.maximumf %4, %5 : vector<8x1xf32>
    %7 = math.rsqrt %6 : vector<8x1xf32>
    %cst_4 = arith.constant 1.41421354 : f32
    %8 = vector.broadcast %cst_4 : f32 to vector<8x1xf32>
    %9 = arith.mulf %8, %7 : vector<8x1xf32>
    %10 = arith.mulf %1, %1 : vector<8x32xf32>
    %cst_5 = arith.constant dense<0.000000e+00> : vector<8xf32>
    %11 = vector.multi_reduction <add>, %10, %cst_5 [1] : vector<8x32xf32> to vector<8xf32>
    %12 = vector.shape_cast %11 : vector<8xf32> to vector<8x1xf32>
    %cst_6 = arith.constant 1.000000e-24 : f32
    %13 = vector.broadcast %cst_6 : f32 to vector<8x1xf32>
    %14 = arith.maximumf %12, %13 : vector<8x1xf32>
    %15 = math.rsqrt %14 : vector<8x1xf32>
    %cst_7 = arith.constant 1.41421354 : f32
    %16 = vector.broadcast %cst_7 : f32 to vector<8x1xf32>
    %17 = arith.mulf %16, %15 : vector<8x1xf32>
    %18 = vector.broadcast %9 : vector<8x1xf32> to vector<8x32xf32>
    %19 = arith.mulf %0, %18 : vector<8x32xf32>
    %20 = vector.broadcast %17 : vector<8x1xf32> to vector<8x32xf32>
    %21 = arith.mulf %1, %20 : vector<8x32xf32>
    %c0_8 = arith.constant 0 : index
    %c0_9 = arith.constant 0 : index
    %c0_10 = arith.constant 0 : index
    %22 = vector.load %arg3[%c0_8, %c0_9, %c0_10] : memref<2x8x32xf32, #tpu.memory_space<vmem>>, vector<1x8x32xf32>
    %23 = vector.shape_cast %22 : vector<1x8x32xf32> to vector<8x32xf32>
    %24 = vector.shape_cast %19 : vector<8x32xf32> to vector<1x8x32xf32>
    tpu.vector_store %arg3[%c0_8, %c0_9, %c0_10], %24 {strides = array<i32>} : memref<2x8x32xf32, #tpu.memory_space<vmem>>, vector<1x8x32xf32>,
    %c1 = arith.constant 1 : index
    %c0_11 = arith.constant 0 : index
    %c0_12 = arith.constant 0 : index
    %25 = vector.load %arg3[%c1, %c0_11, %c0_12] : memref<2x8x32xf32, #tpu.memory_space<vmem>>, vector<1x8x32xf32>
    %26 = vector.shape_cast %25 : vector<1x8x32xf32> to vector<8x32xf32>
    %27 = vector.shape_cast %21 : vector<8x32xf32> to vector<1x8x32xf32>
    tpu.vector_store %arg3[%c1, %c0_11, %c0_12], %27 {strides = array<i32>} : memref<2x8x32xf32, #tpu.memory_space<vmem>>, vector<1x8x32xf32>,
    %28 = arith.mulf %19, %21 : vector<8x32xf32>
    %cst_13 = arith.constant dense<0.000000e+00> : vector<8xf32>
    %29 = vector.multi_reduction <add>, %28, %cst_13 [1] : vector<8x32xf32> to vector<8xf32>
    %30 = vector.shape_cast %29 : vector<8xf32> to vector<8x1xf32>
    %c0_14 = arith.constant 0 : index
    %c0_15 = arith.constant 0 : index
    %31 = vector.load %arg4[%c0_14, %c0_15] : memref<8x1xf32, #tpu.memory_space<vmem>>, vector<8x1xf32>
    tpu.vector_store %arg4[%c0_14, %c0_15], %30 {strides = array<i32>} : memref<8x1xf32, #tpu.memory_space<vmem>>, vector<8x1xf32>,
    return
  }
  func.func @transform_0(%arg0: i32) -> (i32, i32) {
    %c0_i32 = arith.constant 0 : i32
    %c0_i32_0 = arith.constant 0 : i32
    return %arg0, %c0_i32 : i32, i32
  }
  func.func @transform_1(%arg0: i32) -> (i32, i32) {
    %c0_i32 = arith.constant 0 : i32
    %c0_i32_0 = arith.constant 0 : i32
    return %arg0, %c0_i32 : i32, i32
  }
  func.func @transform_2(%arg0: i32) -> (i32, i32, i32) {
    %c0_i32 = arith.constant 0 : i32
    %c0_i32_0 = arith.constant 0 : i32
    %c0_i32_1 = arith.constant 0 : i32
    return %c0_i32, %arg0, %c0_i32_0 : i32, i32, i32
  }
  func.func @transform_3(%arg0: i32) -> (i32, i32) {
    %c0_i32 = arith.constant 0 : i32
    %c0_i32_0 = arith.constant 0 : i32
    return %arg0, %c0_i32 : i32, i32
  }
}

</mosaic_0001>

<llo_original>
// kernel: tpu_custom_call.1
$region0: #{tpu_custom_call.1}
  #allocation0 [shape = 'u32[]', space=smem, size = 0x4, offset = 0x4, fixed_abs, tag = 'smem constant byte address 0x4 - core index']
  #allocation1 [shape = 'u32[144,128]{1,0:T(1,128)}', space=vmem, size = 0x12000, scoped, tag = 'internal scratch']
  %s0 = inlined_call_operand.hbm [shape: f32[8,32], index: 0, kind: input, shape index: {}]
  %s1 = inlined_call_operand.hbm [shape: f32[8,32], index: 1, kind: input, shape index: {}]
  %s2 = inlined_call_operand.hbm [shape: f32[2,8,32], index: 2, kind: output, shape index: {0}]
  %s3 = inlined_call_operand.vmem [shape: f32[8,1], index: 3, kind: output, shape index: {1}]
  %4 = xla_tuple %s2, %s3
  %s5 = sld [smem:[#allocation0]]
  $region34: #{tpu_custom_call.1} parent=0
    _
  %s7 = ssub.s32 1, %s5
  %s8 = scalar_select 0, %s7, %s5
  $region1: #{tpu_custom_call.1} parent=0
    #allocation2 [shape = 'u8[4096]{0}', space=vmem, size = 0x1000, scoped, tag = 'input window, operand 0, single buffered']
    #allocation3 [shape = 's32[1]{0}', space=sflag, size = 0x4, scoped, tag = 'scoped memory for tpu_custom_call.1']
    #allocation4 [shape = 's32[1]{0}', space=sflag, size = 0x4, scoped, tag = 'scoped memory for tpu_custom_call.1']
    #allocation5 [shape = 'u8[4096]{0}', space=vmem, size = 0x1000, scoped, tag = 'input window, operand 1, single buffered']
    #allocation6 [shape = 's32[1]{0}', space=sflag, size = 0x4, scoped, tag = 'scoped memory for tpu_custom_call.1']
    #allocation7 [shape = 'u8[8192]{0}', space=vmem, size = 0x2000, scoped, tag = 'output window, operand 0, single buffered']
    %9 = vsyncpa [#allocation3], 0
    %10 = vsyncpa [#allocation6], 0
    %11 = vsyncpa [#allocation4], 0
    // Predicated region
    $region2: #{tpu_custom_call.1} parent=1 // pred_check
      _
    $region3: #{tpu_custom_call.1} parent=1 // pred_check_branch
      %13 = sbr.rel (0) target = $region5
    $region4: #{tpu_custom_call.1} parent=1 // pred_region
      %s15 = ssub.s32 128, 128
      %16 = vsyncadd [#allocation3], %s15
      %s18 = sshll.u32 [#allocation2], 4
      %s19 = int_to_ptr.vmem [resolvable:$true] %s18
      %21 = dma.hbm_to_vmem [thread:$0]  %s0, 128, %s19, [#allocation3]
    $region5: #{tpu_custom_call.1} parent=1 // pred_fallthru
      _
    // Predicated region
    $region6: #{tpu_custom_call.1} parent=1 // pred_check
      _
    $region7: #{tpu_custom_call.1} parent=1 // pred_check_branch
      %23 = sbr.rel (0) target = $region9
    $region8: #{tpu_custom_call.1} parent=1 // pred_region
      %s25 = ssub.s32 128, 128
      %26 = vsyncadd [#allocation6], %s25
      %s28 = sshll.u32 [#allocation5], 4
      %s29 = int_to_ptr.vmem [resolvable:$true] %s28
      %31 = dma.hbm_to_vmem [thread:$0]  %s1, 128, %s29, [#allocation6]
    $region9: #{tpu_custom_call.1} parent=1 // pred_fallthru
      _
    // Predicated region
    $region10: #{tpu_custom_call.1} parent=1 // pred_check
      _
    $region11: #{tpu_custom_call.1} parent=1 // pred_check_branch
      %33 = sbr.rel (0) target = $region13
    $region12: #{tpu_custom_call.1} parent=1 // pred_region
      %34 = dma.done [#allocation3], 128
    $region13: #{tpu_custom_call.1} parent=1 // pred_fallthru
      _
    // Predicated region
    $region14: #{tpu_custom_call.1} parent=1 // pred_check
      _
    $region15: #{tpu_custom_call.1} parent=1 // pred_check_branch
      %36 = sbr.rel (0) target = $region17
    $region16: #{tpu_custom_call.1} parent=1 // pred_region
      %37 = dma.done [#allocation6], 128
    $region17: #{tpu_custom_call.1} parent=1 // pred_fallthru
      _
    %v38 = vld [vmem:[#allocation2] sm:$0xff]
    %v39 = vld [vmem:[#allocation5] sm:$0xff]
    %v40 = vmul.f32 %v38, %v38
    %vm41 = vcmask 261120
    %v42 = vsel %vm41, %v40, 0.0
    %43 = vadd.xlane.f32.xlu0 %v42
    %v44 = vpop.xlane.xlu0 %43
    %v45 = vmax.f32 %v44, 1e-24
    %v46 = vrsqrt.pop %v45
    %v47 = vmul.f32 %v46, 1.4142135
    %v48 = vmul.f32 %v39, %v39
    %v49 = vsel %vm41, %v48, 0.0
    %50 = vadd.xlane.f32.xlu0 %v49
    %v51 = vpop.xlane.xlu0 %50
    %v52 = vmax.f32 %v51, 1e-24
    %v53 = vrsqrt.pop %v52
    %v54 = vmul.f32 %v53, 1.4142135
    %v55 = vmul.f32 %v38, %v47
    %v56 = vmul.f32 %v39, %v54
    %57 = vst.msk [vmem:[#allocation7] sm:$0xff] %vm41, %v55
    %s58 = scalar_lea.vmem [#allocation7], 8
    %59 = vst.msk [vmem:[%s58] sm:$0xff] %vm41, %v56
    %v60 = vmul.f32 %v55, %v56
    %v61 = vsel %vm41, %v60, 0.0
    %62 = vadd.xlane.f32.xlu0 %v61
    %v63 = vpop.xlane.xlu0 %62
    %vm64 = vcmask 7168
    %65 = vst.msk [vmem:[%s3] sm:$0xff] %vm64, %v63
    // Predicated region
    $region18: #{tpu_custom_call.1} parent=1 // pred_check
      _
    $region19: #{tpu_custom_call.1} parent=1 // pred_check_branch
      %67 = sbr.rel (0) target = $region21
    $region20: #{tpu_custom_call.1} parent=1 // pred_region
      %s69 = ssub.s32 256, 256
      %70 = vsyncadd [#allocation4], %s69
      %s71 = sshll.u32 [#allocation7], 4
      %s72 = int_to_ptr.vmem [resolvable:$true] %s71
      %77 = dma.vmem_to_hbm [thread:$0]  %s72, 256, %s2, [#allocation4], 128, 128, 8
    $region21: #{tpu_custom_call.1} parent=1 // pred_fallthru
      _
    // Predicated region
    $region22: #{tpu_custom_call.1} parent=1 // pred_check
      _
    $region23: #{tpu_custom_call.1} parent=1 // pred_check_branch
      %79 = sbr.rel (0) target = $region25
    $region24: #{tpu_custom_call.1} parent=1 // pred_region
      _
    $region25: #{tpu_custom_call.1} parent=1 // pred_fallthru
      _
    // Predicated region
    $region26: #{tpu_custom_call.1} parent=1 // pred_check
      _
    $region27: #{tpu_custom_call.1} parent=1 // pred_check_branch
      %81 = sbr.rel (0) target = $region29
    $region28: #{tpu_custom_call.1} parent=1 // pred_region
      %82 = dma.done [#allocation4], 256
    $region29: #{tpu_custom_call.1} parent=1 // pred_fallthru
      _
    // Predicated region
    $region30: #{tpu_custom_call.1} parent=1 // pred_check
      _
    $region31: #{tpu_custom_call.1} parent=1 // pred_check_branch
      %84 = sbr.rel (0) target = $region33
    $region32: #{tpu_custom_call.1} parent=1 // pred_region
      _
    $region33: #{tpu_custom_call.1} parent=1 // pred_fallthru
      _
    %85 = vsyncpa [#allocation3], 1
    %86 = vsyncpa [#allocation6], 1
    %87 = vsyncpa [#allocation4], 1

</llo_original>
